<compile_context>
chip_gen: v7x
topology: tpu7x:2x2x1
jax: 0.10.0
libtpu: 0.0.40
codegen_flags: <defaults>
</compile_context>

<pallas_src>
import functools

import jax
import jax.numpy as jnp
from jax.experimental import pallas as pl
from jax.experimental.pallas import tpu as pltpu


_LANES = 128
_MAX_CHUNKS = 64          # cap on the unrolled lane-fold loop (tile <= 8192 lanes)
_TILE_BYTES = 1 << 20     # ~1 MiB per input tile per pipeline buffer


def _round_up(a, b):
    return (a + b - 1) // b * b


def _cdiv(a, b):
    return (a + b - 1) // b


def _dice_kernel(x_ref, t_ref, w_ref, o_ref, inter_acc, xs_acc, ts_acc, *,
                 inv_n, chunks):
    step = pl.program_id(0)

    @pl.when(step == 0)
    def _init():
        inter_acc[...] = jnp.zeros_like(inter_acc)
        xs_acc[...] = jnp.zeros_like(xs_acc)
        ts_acc[...] = jnp.zeros_like(ts_acc)

    # Lane-parallel accumulation: fold the TILE_HW lanes of this block into
    # 128-lane partial sums with pure VPU adds (cross-lane reduction is
    # deferred to the finalize step).
    acc_i = inter_acc[...]
    acc_x = xs_acc[...]
    acc_t = ts_acc[...]
    for j in range(chunks):                       # static unroll, 128-aligned slices
        lo = j * _LANES
        xc = x_ref[:, lo:lo + _LANES].astype(jnp.float32)
        tc = t_ref[:, lo:lo + _LANES].astype(jnp.float32)
        acc_i = acc_i + xc * tc
        acc_x = acc_x + xc
        acc_t = acc_t + tc
    inter_acc[...] = acc_i
    xs_acc[...] = acc_x
    ts_acc[...] = acc_t

    @pl.when(step == pl.num_programs(0) - 1)
    def _finalize():
        smooth = jnp.float32(1.0)
        inter = jnp.sum(inter_acc[...], axis=-1, keepdims=True)   # (N*C, 1)
        xsum = jnp.sum(xs_acc[...], axis=-1, keepdims=True)
        tsum = jnp.sum(ts_acc[...], axis=-1, keepdims=True)
        dice = 2.0 * (inter + smooth) / (xsum + tsum + smooth)    # (N*C, 1)
        # total = sum_c w[c]*(1 - mean_n dice[n,c]) = (1/N)*sum_{n,c} w[c]*(1-dice)
        total = jnp.sum(w_ref[...] * (1.0 - dice)) * jnp.float32(inv_n)
        o_ref[0, 0] = total


def _choose_tile(nc, hw, itemsize):
    lanes = (_TILE_BYTES // max(1, nc * itemsize)) // _LANES * _LANES
    lanes = max(_LANES, min(lanes, _MAX_CHUNKS * _LANES))
    return min(lanes, _round_up(hw, _LANES))


def multiclass_dice_loss(x, target, weights=None, *, tile_hw=None):
    """x, target: (N, C, H, W), any float dtype. weights: optional (C,). -> scalar f32."""
    N, C, H, W = x.shape
    assert target.shape == x.shape
    nc = N * C
    hw = H * W

    # Keep the narrow HBM dtype; the f32 cast happens inside the kernel.
    x2 = x.reshape(nc, hw)
    t2 = target.reshape(nc, hw)

    itemsize = max(jnp.dtype(x2.dtype).itemsize, jnp.dtype(t2.dtype).itemsize)
    if tile_hw is None:
        tile_hw = _choose_tile(nc, hw, itemsize)
    tile_hw = max(_LANES, (int(tile_hw) // _LANES) * _LANES)

    # Balance tiles so zero-padding of the spatial axis stays small.
    hw128 = _round_up(hw, _LANES)
    tile_hw = min(tile_hw, hw128)
    num_tiles = _cdiv(hw128, tile_hw)
    tile_hw = _round_up(_cdiv(hw128, num_tiles), _LANES)
    hw_pad = tile_hw * num_tiles
    if hw_pad != hw:
        pad = hw_pad - hw
        x2 = jnp.pad(x2, ((0, 0), (0, pad)))      # zeros don't change any sum
        t2 = jnp.pad(t2, ((0, 0), (0, pad)))

    if weights is None:
        w_col = jnp.ones((nc, 1), jnp.float32)
    else:
        w = jnp.asarray(weights, dtype=jnp.float32).reshape(1, C)
        w_col = jnp.broadcast_to(w, (N, C)).reshape(nc, 1)

    kernel = functools.partial(_dice_kernel, inv_n=1.0 / N,
                               chunks=tile_hw // _LANES)

    # TODO(synk): on v7x, a second "parallel" grid axis over row blocks of N*C
    # (per-block partial outputs + tiny host-side combine) would use both
    # TensorCores; omitted to keep a single-scalar-output kernel.
    out = pl.pallas_call(
        kernel,
        out_shape=jax.ShapeDtypeStruct((1, 1), jnp.float32),
        grid=(num_tiles,),
        in_specs=[
            pl.BlockSpec((nc, tile_hw), lambda k: (0, k)),
            pl.BlockSpec((nc, tile_hw), lambda k: (0, k)),
            pl.BlockSpec((nc, 1), lambda k: (0, 0)),   # weights, constant block
        ],
        out_specs=pl.BlockSpec(memory_space=pltpu.SMEM),
        scratch_shapes=[
            pltpu.VMEM((nc, _LANES), jnp.float32),     # intersection partials
            pltpu.VMEM((nc, _LANES), jnp.float32),     # x-sum partials
            pltpu.VMEM((nc, _LANES), jnp.float32),     # t-sum partials
        ],
        compiler_params=pltpu.CompilerParams(
            dimension_semantics=("arbitrary",),        # reduction axis with carried scratch
            vmem_limit_bytes=32 * 1024 * 1024,
        ),
    )(x2, t2, w_col)
    return out[0, 0]


def _reference(x, target, weights=None):
    # Pure-JAX reference mirroring the PyTorch module math.
    N, C, H, W = x.shape
    xf = x.reshape(N, C, -1).astype(jnp.float32)
    tf = target.reshape(N, C, -1).astype(jnp.float32)
    inter = jnp.sum(xf * tf, axis=2)
    dice = 2.0 * (inter + 1.0) / (jnp.sum(xf, axis=2) + jnp.sum(tf, axis=2) + 1.0)
    per_class = 1.0 - jnp.sum(dice, axis=0) / N
    if weights is None:
        return jnp.sum(per_class)
    return jnp.sum(jnp.asarray(weights, jnp.float32) * per_class)


if __name__ == "__main__":
    key = jax.random.PRNGKey(0)
    k1, k2, k3 = jax.random.split(key, 3)

    N, C, H, W = 2, 4, 16, 16
    # "input": soft predictions in [0, 1]; "target": one-hot encoded per class.
    x = jax.nn.sigmoid(jax.random.normal(k1, (N, C, H, W), dtype=jnp.float32))
    cls = jax.random.randint(k2, (N, H, W), 0, C)
    target = jnp.transpose(jax.nn.one_hot(cls, C, dtype=jnp.float32), (0, 3, 1, 2))

    # 1) unweighted f32, small tile so the multi-step accumulator path runs.
    loss = jax.block_until_ready(multiclass_dice_loss(x, target, tile_hw=128))
    ref = _reference(x, target)
    assert jnp.allclose(loss, ref, atol=1e-5, rtol=1e-5), (loss, ref)

    # 2) weighted + bf16 inputs (f32 cast happens inside the kernel), default tiling.
    wts = jax.random.uniform(k3, (C,), dtype=jnp.float32)
    xb = x.astype(jnp.bfloat16)
    tb = target.astype(jnp.bfloat16)
    loss_w = jax.block_until_ready(multiclass_dice_loss(xb, tb, weights=wts))
    ref_w = _reference(xb.astype(jnp.float32), tb.astype(jnp.float32), wts)
    assert jnp.allclose(loss_w, ref_w, atol=1e-4, rtol=1e-4), (loss_w, ref_w)

    print("KERNEL_OK")
</pallas_src>

<mosaic_0001>
module attributes {stable_mosaic.version = 11 : i64} {
  func.func @_dice_kernel(%arg0: i32, %arg1: memref<8x128xf32, #tpu.memory_space<vmem>>, %arg2: memref<8x128xf32, #tpu.memory_space<vmem>>, %arg3: memref<8x1xf32, #tpu.memory_space<vmem>>, %arg4: memref<1x1xf32, #tpu.memory_space<smem>>, %arg5: memref<8x128xf32, #tpu.memory_space<vmem>>, %arg6: memref<8x128xf32, #tpu.memory_space<vmem>>, %arg7: memref<8x128xf32, #tpu.memory_space<vmem>>) attributes {dimension_semantics = [#tpu.dimension_semantics<arbitrary>], iteration_bounds = array<i64: 2>, scalar_prefetch = 0 : i64, scratch_operands = 3 : i64, tpu.core_type = #tpu.core_type<tc>, window_params = [{transform_indices = @transform_0, window_bounds = array<i64: 8, 128>}, {transform_indices = @transform_1, window_bounds = array<i64: 8, 128>}, {pipeline_mode = #tpu.pipeline_mode<synchronous>, transform_indices = @transform_2, window_bounds = array<i64: 8, 1>}, {transform_indices = @transform_3, window_bounds = array<i64: 1, 1>}]} {
    %c0_i32 = arith.constant 0 : i32
    %0 = arith.cmpi eq, %arg0, %c0_i32 : i32
    %1 = arith.extui %0 : i1 to i32
    %c0_i32_0 = arith.constant 0 : i32
    %2 = arith.cmpi ne, %1, %c0_i32_0 : i32
    scf.if %2 {
      %cst = arith.constant 0.000000e+00 : f32
      %18 = vector.broadcast %cst : f32 to vector<8x128xf32>
      %c0_17 = arith.constant 0 : index
      %c0_18 = arith.constant 0 : index
      %19 = vector.load %arg5[%c0_17, %c0_18] : memref<8x128xf32, #tpu.memory_space<vmem>>, vector<8x128xf32>
      tpu.vector_store %arg5[%c0_17, %c0_18], %18 {strides = array<i32>} : memref<8x128xf32, #tpu.memory_space<vmem>>, vector<8x128xf32>,
      %cst_19 = arith.constant 0.000000e+00 : f32
      %20 = vector.broadcast %cst_19 : f32 to vector<8x128xf32>
      %c0_20 = arith.constant 0 : index
      %c0_21 = arith.constant 0 : index
      %21 = vector.load %arg6[%c0_20, %c0_21] : memref<8x128xf32, #tpu.memory_space<vmem>>, vector<8x128xf32>
      tpu.vector_store %arg6[%c0_20, %c0_21], %20 {strides = array<i32>} : memref<8x128xf32, #tpu.memory_space<vmem>>, vector<8x128xf32>,
      %cst_22 = arith.constant 0.000000e+00 : f32
      %22 = vector.broadcast %cst_22 : f32 to vector<8x128xf32>
      %c0_23 = arith.constant 0 : index
      %c0_24 = arith.constant 0 : index
      %23 = vector.load %arg7[%c0_23, %c0_24] : memref<8x128xf32, #tpu.memory_space<vmem>>, vector<8x128xf32>
      tpu.vector_store %arg7[%c0_23, %c0_24], %22 {strides = array<i32>} : memref<8x128xf32, #tpu.memory_space<vmem>>, vector<8x128xf32>,
    } else {
    }
    %c0 = arith.constant 0 : index
    %c0_1 = arith.constant 0 : index
    %3 = vector.load %arg5[%c0, %c0_1] : memref<8x128xf32, #tpu.memory_space<vmem>>, vector<8x128xf32>
    %c0_2 = arith.constant 0 : index
    %c0_3 = arith.constant 0 : index
    %4 = vector.load %arg6[%c0_2, %c0_3] : memref<8x128xf32, #tpu.memory_space<vmem>>, vector<8x128xf32>
    %c0_4 = arith.constant 0 : index
    %c0_5 = arith.constant 0 : index
    %5 = vector.load %arg7[%c0_4, %c0_5] : memref<8x128xf32, #tpu.memory_space<vmem>>, vector<8x128xf32>
    %c0_6 = arith.constant 0 : index
    %c0_7 = arith.constant 0 : index
    %6 = vector.load %arg1[%c0_6, %c0_7] : memref<8x128xf32, #tpu.memory_space<vmem>>, vector<8x128xf32>
    %c0_8 = arith.constant 0 : index
    %c0_9 = arith.constant 0 : index
    %7 = vector.load %arg2[%c0_8, %c0_9] : memref<8x128xf32, #tpu.memory_space<vmem>>, vector<8x128xf32>
    %8 = arith.mulf %6, %7 : vector<8x128xf32>
    %9 = arith.addf %3, %8 : vector<8x128xf32>
    %10 = arith.addf %4, %6 : vector<8x128xf32>
    %11 = arith.addf %5, %7 : vector<8x128xf32>
    %c0_10 = arith.constant 0 : index
    %c0_11 = arith.constant 0 : index
    %12 = vector.load %arg5[%c0_10, %c0_11] : memref<8x128xf32, #tpu.memory_space<vmem>>, vector<8x128xf32>
    tpu.vector_store %arg5[%c0_10, %c0_11], %9 {strides = array<i32>} : memref<8x128xf32, #tpu.memory_space<vmem>>, vector<8x128xf32>,
    %c0_12 = arith.constant 0 : index
    %c0_13 = arith.constant 0 : index
    %13 = vector.load %arg6[%c0_12, %c0_13] : memref<8x128xf32, #tpu.memory_space<vmem>>, vector<8x128xf32>
    tpu.vector_store %arg6[%c0_12, %c0_13], %10 {strides = array<i32>} : memref<8x128xf32, #tpu.memory_space<vmem>>, vector<8x128xf32>,
    %c0_14 = arith.constant 0 : index
    %c0_15 = arith.constant 0 : index
    %14 = vector.load %arg7[%c0_14, %c0_15] : memref<8x128xf32, #tpu.memory_space<vmem>>, vector<8x128xf32>
    tpu.vector_store %arg7[%c0_14, %c0_15], %11 {strides = array<i32>} : memref<8x128xf32, #tpu.memory_space<vmem>>, vector<8x128xf32>,
    %c1_i32 = arith.constant 1 : i32
    %15 = arith.cmpi eq, %arg0, %c1_i32 : i32
    %16 = arith.extui %15 : i1 to i32
    %c0_i32_16 = arith.constant 0 : i32
    %17 = arith.cmpi ne, %16, %c0_i32_16 : i32
    scf.if %17 {
      %c0_17 = arith.constant 0 : index
      %c0_18 = arith.constant 0 : index
      %18 = vector.load %arg5[%c0_17, %c0_18] : memref<8x128xf32, #tpu.memory_space<vmem>>, vector<8x128xf32>
      %cst = arith.constant dense<0.000000e+00> : vector<8xf32>
      %19 = vector.multi_reduction <add>, %18, %cst [1] : vector<8x128xf32> to vector<8xf32>
      %20 = vector.shape_cast %19 : vector<8xf32> to vector<8x1xf32>
      %c0_19 = arith.constant 0 : index
      %c0_20 = arith.constant 0 : index
      %21 = vector.load %arg6[%c0_19, %c0_20] : memref<8x128xf32, #tpu.memory_space<vmem>>, vector<8x128xf32>
      %cst_21 = arith.constant dense<0.000000e+00> : vector<8xf32>
      %22 = vector.multi_reduction <add>, %21, %cst_21 [1] : vector<8x128xf32> to vector<8xf32>
      %23 = vector.shape_cast %22 : vector<8xf32> to vector<8x1xf32>
      %c0_22 = arith.constant 0 : index
      %c0_23 = arith.constant 0 : index
      %24 = vector.load %arg7[%c0_22, %c0_23] : memref<8x128xf32, #tpu.memory_space<vmem>>, vector<8x128xf32>
      %cst_24 = arith.constant dense<0.000000e+00> : vector<8xf32>
      %25 = vector.multi_reduction <add>, %24, %cst_24 [1] : vector<8x128xf32> to vector<8xf32>
      %26 = vector.shape_cast %25 : vector<8xf32> to vector<8x1xf32>
      %cst_25 = arith.constant 1.000000e+00 : f32
      %27 = vector.broadcast %cst_25 : f32 to vector<8x1xf32>
      %28 = arith.addf %20, %27 : vector<8x1xf32>
      %cst_26 = arith.constant 2.000000e+00 : f32
      %29 = vector.broadcast %cst_26 : f32 to vector<8x1xf32>
      %30 = arith.mulf %29, %28 : vector<8x1xf32>
      %31 = arith.addf %23, %26 : vector<8x1xf32>
      %cst_27 = arith.constant 1.000000e+00 : f32
      %32 = vector.broadcast %cst_27 : f32 to vector<8x1xf32>
      %33 = arith.addf %31, %32 : vector<8x1xf32>
      %34 = arith.divf %30, %33 : vector<8x1xf32>
      %c0_28 = arith.constant 0 : index
      %c0_29 = arith.constant 0 : index
      %35 = vector.load %arg3[%c0_28, %c0_29] : memref<8x1xf32, #tpu.memory_space<vmem>>, vector<8x1xf32>
      %cst_30 = arith.constant 1.000000e+00 : f32
      %36 = vector.broadcast %cst_30 : f32 to vector<8x1xf32>
      %37 = arith.subf %36, %34 : vector<8x1xf32>
      %38 = arith.mulf %35, %37 : vector<8x1xf32>
      %39 = vector.shape_cast %38 : vector<8x1xf32> to vector<1x8x1xf32>
      %cst_31 = arith.constant dense<0.000000e+00> : vector<1xf32>
      %40 = vector.multi_reduction <add>, %39, %cst_31 [1, 2] : vector<1x8x1xf32> to vector<1xf32>
      %41 = vector.shape_cast %40 : vector<1xf32> to vector<1x1x1xf32>
      %42 = vector.extract %41[0, 0, 0] : f32 from vector<1x1x1xf32>
      %cst_32 = arith.constant 5.000000e-01 : f32
      %43 = arith.mulf %42, %cst_32 : f32
      %c0_33 = arith.constant 0 : index
      %c0_34 = arith.constant 0 : index
      %44 = memref.load %arg4[%c0_33, %c0_34] : memref<1x1xf32, #tpu.memory_space<smem>>
      memref.store %43, %arg4[%c0_33, %c0_34] : memref<1x1xf32, #tpu.memory_space<smem>>
    } else {
    }
    return
  }
  func.func @transform_0(%arg0: i32) -> (i32, i32) {
    %c0_i32 = arith.constant 0 : i32
    %c0_i32_0 = arith.constant 0 : i32
    return %c0_i32, %arg0 : i32, i32
  }
  func.func @transform_1(%arg0: i32) -> (i32, i32) {
    %c0_i32 = arith.constant 0 : i32
    %c0_i32_0 = arith.constant 0 : i32
    return %c0_i32, %arg0 : i32, i32
  }
  func.func @transform_2(%arg0: i32) -> (i32, i32) {
    %c0_i32 = arith.constant 0 : i32
    %c0_i32_0 = arith.constant 0 : i32
    %c0_i32_1 = arith.constant 0 : i32
    return %c0_i32, %c0_i32_0 : i32, i32
  }
  func.func @transform_3(%arg0: i32) -> (i32, i32) {
    %c0_i32 = arith.constant 0 : i32
    %c0_i32_0 = arith.constant 0 : i32
    %c0_i32_1 = arith.constant 0 : i32
    return %c0_i32, %c0_i32_0 : i32, i32
  }
}

</mosaic_0001>

<llo_original>
// kernel: tpu_custom_call.1
$region0: #{tpu_custom_call.1}
  #allocation0 [shape = 'u32[]', space=smem, size = 0x4, offset = 0x4, fixed_abs, tag = 'smem constant byte address 0x4 - core index']
  #allocation1 [shape = 'u32[144,128]{1,0:T(1,128)}', space=vmem, size = 0x12000, scoped, tag = 'internal scratch']
  #allocation2 [shape = 'f32[8,128]{1,0:T(8,128)}', space=vmem, size = 0x1000, scoped, tag = 'scratch operand']
  #allocation3 [shape = 'f32[8,128]{1,0:T(8,128)}', space=vmem, size = 0x1000, scoped, tag = 'scratch operand']
  #allocation4 [shape = 'f32[8,128]{1,0:T(8,128)}', space=vmem, size = 0x1000, scoped, tag = 'scratch operand']
  %s0 = inlined_call_operand.hbm [shape: f32[8,256], index: 0, kind: input, shape index: {}]
  %s1 = inlined_call_operand.hbm [shape: f32[8,256], index: 1, kind: input, shape index: {}]
  %s2 = inlined_call_operand.vmem [shape: f32[8,1], index: 2, kind: input, shape index: {}]
  %s3 = inlined_call_operand.hbm [shape: f32[1,1], index: 3, kind: output, shape index: {}]
  %s4 = sld [smem:[#allocation0]]
  $region61: #{tpu_custom_call.1} parent=0
    _
  %s6 = ssub.s32 1, %s4
  %s7 = scalar_select 0, %s6, %s4
  $region1: #{tpu_custom_call.1} parent=0
    #allocation5 [shape = 'u8[8192]{0}', space=vmem, size = 0x2000, scoped, tag = 'input window, operand 0']
    #allocation6 [shape = 's32[2]{0}', space=sflag, size = 0x8, scoped, tag = 'scoped memory for tpu_custom_call.1']
    #allocation7 [shape = 's32[2]{0}', space=sflag, size = 0x8, scoped, tag = 'scoped memory for tpu_custom_call.1']
    #allocation8 [shape = 'u8[8192]{0}', space=vmem, size = 0x2000, scoped, tag = 'input window, operand 1']
    #allocation9 [shape = 's32[2]{0}', space=sflag, size = 0x8, scoped, tag = 'scoped memory for tpu_custom_call.1']
    #allocation10 [shape = 'u8[512]{0}', space=smem, size = 0x200, scoped, tag = 'output window, operand 0, single buffered']
    %8 = vsyncpa [#allocation6], 0
    %s9 = scalar_lea.sflag [#allocation6], 1
    %10 = vsyncpa %s9, 0
    %11 = vsyncpa [#allocation9], 0
    %s12 = scalar_lea.sflag [#allocation9], 1
    %13 = vsyncpa %s12, 0
    %14 = vsyncpa [#allocation7], 0
    loop: start=0, step=1, limit=4
    $region2: #{tpu_custom_call.1} parent=1 // loop_pre_header
      _
    $region3: #{tpu_custom_call.1} parent=1 // loop_header
      %s16 = sphi 0, %s20
      %p17 = scmp.ge.s32.totalorder %s16, 4
      %s26 = sphi 0, %s28
      %s29 = sphi 0, %s26
      %s30 = sphi 0, %s29
      %s46 = sphi 0, %s30
      %s52 = sphi 0, %s54
      %s55 = sphi 0, %s52
      %s56 = sphi 0, %s55
      %s72 = sphi 0, %s56
      %s76 = sphi 0, %s76
      %s78 = sphi 0, %s76
      %s79 = sphi 0, %s78
      %s93 = sphi 0, %s79
      %s97 = sphi 0, %s97
      %s99 = sphi 0, %s97
      %s100 = sphi 0, %s99
      %s114 = sphi 0, %s100
    $region4: #{tpu_custom_call.1} parent=1 // loop_header_branch
      %19 = sbr.rel (%p17) target = $region8
    $region5: #{tpu_custom_call.1} parent=1 // loop_body
      %s21 = ssub.s32 %s16, 1
      %s22 = ssub.s32 %s16, 2
      %s23 = sadd.s32 %s16, 1
      %s24 = ssub.s32 %s16, %s23
      %p25 = scmp.eq.s32.totalorder %s24, 0
      %s27 = sadd.s32 %s26, 1
      %s28 = scalar_select %p25, %s26, %s27
      %p31 = pneg %p25
      %p32 = scmp.eq.s32.totalorder %s16, 1
      %p33 = por %p31, %p32
      %p34 = scmp.ne.s32.totalorder %s26, %s29
      %p35 = scmp.eq.s32.totalorder %s16, 0
      %p36 = por %p34, %p35
      %p37 = scmp.ne.s32.totalorder %s26, %s29
      %p38 = scmp.eq.s32.totalorder %s21, 1
      %p39 = por %p37, %p38
      %p40 = scmp.ne.s32.totalorder %s29, %s30
      %p41 = scmp.eq.s32.totalorder %s21, 0
      %p42 = por %p40, %p41
      %p43 = scmp.ne.s32.totalorder %s29, %s30
      %p44 = scmp.eq.s32.totalorder %s22, 1
      %p45 = por %p43, %p44
      %p47 = scmp.ne.s32.totalorder %s30, %s46
      %p48 = scmp.eq.s32.totalorder %s22, 0
      %p49 = por %p47, %p48
      %s50 = ssub.s32 %s16, %s23
      %p51 = scmp.eq.s32.totalorder %s50, 0
      %s53 = sadd.s32 %s52, 1
      %s54 = scalar_select %p51, %s52, %s53
      %p57 = pneg %p51
      %p58 = scmp.eq.s32.totalorder %s16, 1
      %p59 = por %p57, %p58
      %p60 = scmp.ne.s32.totalorder %s52, %s55
      %p61 = scmp.eq.s32.totalorder %s16, 0
      %p62 = por %p60, %p61
      %p63 = scmp.ne.s32.totalorder %s52, %s55
      %p64 = scmp.eq.s32.totalorder %s21, 1
      %p65 = por %p63, %p64
      %p66 = scmp.ne.s32.totalorder %s55, %s56
      %p67 = scmp.eq.s32.totalorder %s21, 0
      %p68 = por %p66, %p67
      %p69 = scmp.ne.s32.totalorder %s55, %s56
      %p70 = scmp.eq.s32.totalorder %s22, 1
      %p71 = por %p69, %p70
      %p73 = scmp.ne.s32.totalorder %s56, %s72
      %p74 = scmp.eq.s32.totalorder %s22, 0
      %p75 = por %p73, %p74
      %s77 = sadd.s32 %s76, 1
      %p80 = scmp.eq.s32.totalorder %s16, 1
      %p81 = scmp.ne.s32.totalorder %s76, %s78
      %p82 = scmp.eq.s32.totalorder %s16, 0
      %p83 = por %p81, %p82
      %p84 = scmp.ne.s32.totalorder %s76, %s78
      %p85 = scmp.eq.s32.totalorder %s21, 1
      %p86 = por %p84, %p85
      %p87 = scmp.ne.s32.totalorder %s78, %s79
      %p88 = scmp.eq.s32.totalorder %s21, 0
      %p89 = por %p87, %p88
      %p90 = scmp.ne.s32.totalorder %s78, %s79
      %p91 = scmp.eq.s32.totalorder %s22, 1
      %p92 = por %p90, %p91
      %p94 = scmp.ne.s32.totalorder %s79, %s93
      %p95 = scmp.eq.s32.totalorder %s22, 0
      %p96 = por %p94, %p95
      %s98 = sadd.s32 %s97, 1
      %p101 = scmp.eq.s32.totalorder %s16, 1
      %p102 = scmp.ne.s32.totalorder %s97, %s99
      %p103 = scmp.eq.s32.totalorder %s16, 0
      %p104 = por %p102, %p103
      %p105 = scmp.ne.s32.totalorder %s97, %s99
      %p106 = scmp.eq.s32.totalorder %s21, 1
      %p107 = por %p105, %p106
      %p108 = scmp.ne.s32.totalorder %s99, %s100
      %p109 = scmp.eq.s32.totalorder %s21, 0
      %p110 = por %p108, %p109
      %p111 = scmp.ne.s32.totalorder %s99, %s100
      %p112 = scmp.eq.s32.totalorder %s22, 1
      %p113 = por %p111, %p112
      %p115 = scmp.ne.s32.totalorder %s100, %s114
      %p116 = scmp.eq.s32.totalorder %s22, 0
      %p117 = por %p115, %p116
      %p118 = scmp.le.s32.totalorder 1, %s16
      %p119 = scmp.lt.s32.totalorder %s16, 3
      %p120 = pnand %p118, %p119
      %p121 = pneg %p120
      // Predicated region
      $region9: #{tpu_custom_call.1} parent=5 // pred_check
        _
      $region10: #{tpu_custom_call.1} parent=5 // pred_check_branch
        %123 = sbr.rel (%p120) target = $region12
      $region11: #{tpu_custom_call.1} parent=5 // pred_region
        %s124 = ssub.s32 %s16, 1
        // Predicated region
        $region13: #{tpu_custom_call.1} parent=11 // pred_check
          %p125 = pneg %p89
        $region14: #{tpu_custom_call.1} parent=11 // pred_check_branch
          %127 = sbr.rel (%p125) target = $region16
        $region15: #{tpu_custom_call.1} parent=11 // pred_region
          _
        $region16: #{tpu_custom_call.1} parent=11 // pred_fallthru
          _
      $region12: #{tpu_custom_call.1} parent=5 // pred_fallthru
        _
      %p128 = scmp.lt.s32.totalorder %s16, 2
      // Predicated region
      $region17: #{tpu_custom_call.1} parent=5 // pred_check
        %p129 = pneg %p128
      $region18: #{tpu_custom_call.1} parent=5 // pred_check_branch
        %131 = sbr.rel (%p129) target = $region20
      $region19: #{tpu_custom_call.1} parent=5 // pred_region
        // Predicated region
        $region21: #{tpu_custom_call.1} parent=19 // pred_check
          %p132 = pneg %p36
        $region22: #{tpu_custom_call.1} parent=19 // pred_check_branch
          %134 = sbr.rel (%p132) target = $region24
        $region23: #{tpu_custom_call.1} parent=19 // pred_region
          %s135 = sand.u32 %s26, 1
          %s136 = scalar_lea.sflag [#allocation6], %s135
          %s137 = sand.u32 %s26, 1
          %s138 = smul.addr %s137, 8
          %s139 = scalar_lea.vmem [#allocation5], %s138
          %s141 = ssub.s32 128, 128
          %142 = vsyncadd %s136, %s141
          %s143 = smul.addr %s16, 128
          %s144 = scalar_lea.hbm %s0, %s143
          %s146 = sshll.u32 %s139, 4
          %s147 = int_to_ptr.vmem [resolvable:$true] %s146
          %149 = dma.hbm_to_vmem [thread:$0]  %s144, 128, %s147, %s136
        $region24: #{tpu_custom_call.1} parent=19 // pred_fallthru
          _
        // Predicated region
        $region25: #{tpu_custom_call.1} parent=19 // pred_check
          %p150 = pneg %p62
        $region26: #{tpu_custom_call.1} parent=19 // pred_check_branch
          %152 = sbr.rel (%p150) target = $region28
        $region27: #{tpu_custom_call.1} parent=19 // pred_region
          %s153 = sand.u32 %s52, 1
          %s154 = scalar_lea.sflag [#allocation9], %s153
          %s155 = sand.u32 %s52, 1
          %s156 = smul.addr %s155, 8
          %s157 = scalar_lea.vmem [#allocation8], %s156
          %s159 = ssub.s32 128, 128
          %160 = vsyncadd %s154, %s159
          %s161 = smul.addr %s16, 128
          %s162 = scalar_lea.hbm %s1, %s161
          %s164 = sshll.u32 %s157, 4
          %s165 = int_to_ptr.vmem [resolvable:$true] %s164
          %167 = dma.hbm_to_vmem [thread:$0]  %s162, 128, %s165, %s154
        $region28: #{tpu_custom_call.1} parent=19 // pred_fallthru
          _
      $region20: #{tpu_custom_call.1} parent=5 // pred_fallthru
        _
      %p168 = scmp.le.s32.totalorder 1, %s16
      %p169 = scmp.lt.s32.totalorder %s16, 3
      %p170 = pnand %p168, %p169
      %p171 = pneg %p170
      // Predicated region
      $region29: #{tpu_custom_call.1} parent=5 // pred_check
        _
      $region30: #{tpu_custom_call.1} parent=5 // pred_check_branch
        %173 = sbr.rel (%p170) target = $region32
      $region31: #{tpu_custom_call.1} parent=5 // pred_region
        %s174 = ssub.s32 %s16, 1
        %s175 = sand.u32 %s29, 1
        %s176 = scalar_lea.sflag [#allocation6], %s175
        %s177 = sand.u32 %s29, 1
        %s178 = smul.addr %s177, 8
        %s179 = scalar_lea.vmem [#allocation5], %s178
        // Predicated region
        $region33: #{tpu_custom_call.1} parent=31 // pred_check
          %p180 = pneg %p42
        $region34: #{tpu_custom_call.1} parent=31 // pred_check_branch
          %182 = sbr.rel (%p180) target = $region36
        $region35: #{tpu_custom_call.1} parent=31 // pred_region
          %183 = dma.done %s176, 128
        $region36: #{tpu_custom_call.1} parent=31 // pred_fallthru
          _
        %s184 = sand.u32 %s55, 1
        %s185 = scalar_lea.sflag [#allocation9], %s184
        %s186 = sand.u32 %s55, 1
        %s187 = smul.addr %s186, 8
        %s188 = scalar_lea.vmem [#allocation8], %s187
        // Predicated region
        $region37: #{tpu_custom_call.1} parent=31 // pred_check
          %p189 = pneg %p68
        $region38: #{tpu_custom_call.1} parent=31 // pred_check_branch
          %191 = sbr.rel (%p189) target = $region40
        $region39: #{tpu_custom_call.1} parent=31 // pred_region
          %192 = dma.done %s185, 128
        $region40: #{tpu_custom_call.1} parent=31 // pred_fallthru
          _
        %s193 = sand.u32 %s29, 1
        %s194 = scalar_lea.sflag [#allocation6], %s193
        %s195 = sand.u32 %s29, 1
        %s196 = smul.addr %s195, 8
        %s197 = scalar_lea.vmem [#allocation5], %s196
        %p198 = pneg %p42
        %p199 = pneg %p39
        %s200 = sand.u32 %s55, 1
        %s201 = scalar_lea.sflag [#allocation9], %s200
        %s202 = sand.u32 %s55, 1
        %s203 = smul.addr %s202, 8
        %s204 = scalar_lea.vmem [#allocation8], %s203
        %p205 = pneg %p68
        %p206 = pneg %p65
        %p207 = pneg %p89
        %p208 = pneg %p86
        %p209 = pneg %p110
        %p210 = pneg %p107
        %p211 = scmp.eq.s32.totalorder %s21, 0
        // Predicated region
        $region41: #{tpu_custom_call.1} parent=31 // pred_check
          %p212 = pneg %p211
        $region42: #{tpu_custom_call.1} parent=31 // pred_check_branch
          %214 = sbr.rel (%p212) target = $region44
        $region43: #{tpu_custom_call.1} parent=31 // pred_region
          %215 = vst [vmem:[#allocation2] sm:$0xff] 0.0
          %216 = vst [vmem:[#allocation3] sm:$0xff] 0.0
          %217 = vst [vmem:[#allocation4] sm:$0xff] 0.0
        $region44: #{tpu_custom_call.1} parent=31 // pred_fallthru
          _
        %v218 = vld [vmem:[#allocation2] sm:$0xff]
        %v219 = vld [vmem:[#allocation3] sm:$0xff]
        %v220 = vld [vmem:[#allocation4] sm:$0xff]
        %v221 = vld [vmem:[%s179] sm:$0xff]
        %v222 = vld [vmem:[%s188] sm:$0xff]
        %v223 = vmul.f32 %v221, %v222
        %v224 = vadd.f32 %v218, %v223
        %v225 = vadd.f32 %v219, %v221
        %v226 = vadd.f32 %v220, %v222
        %227 = vst [vmem:[#allocation2] sm:$0xff] %v224
        %228 = vst [vmem:[#allocation3] sm:$0xff] %v225
        %229 = vst [vmem:[#allocation4] sm:$0xff] %v226
        %p230 = scmp.eq.s32.totalorder %s21, 1
        // Predicated region
        $region45: #{tpu_custom_call.1} parent=31 // pred_check
          %p231 = pneg %p230
        $region46: #{tpu_custom_call.1} parent=31 // pred_check_branch
          %233 = sbr.rel (%p231) target = $region48
        $region47: #{tpu_custom_call.1} parent=31 // pred_region
          %v234 = vld [vmem:[#allocation2] sm:$0xff]
          %235 = vadd.xlane.f32.xlu0 %v234
          %v236 = vpop.xlane.xlu0 %235
          %v237 = vld [vmem:[#allocation3] sm:$0xff]
          %238 = vadd.xlane.f32.xlu0 %v237
          %v239 = vpop.xlane.xlu0 %238
          %v240 = vld [vmem:[#allocation4] sm:$0xff]
          %241 = vadd.xlane.f32.xlu0 %v240
          %v242 = vpop.xlane.xlu0 %241
          %v243 = vadd.f32 %v236, 1.0
          %v244 = vmul.f32 %v243, 2.0
          %v245 = vadd.f32 %v239, %v242
          %v246 = vadd.f32 %v245, 1.0
          %v247 = vrcp.pop %v246
          %v248 = vmul.f32 %v244, %v247
          %v249 = vld [vmem:[%s2] sm:$0xff]
          %v250 = vsub.f32 1.0, %v248
          %v251 = vmul.f32 %v249, %v250
          %vm252 = vcmask 7168
          %v253 = vsel %vm252, %v251, 0.0
          %254 = vadd.xlane.f32.xlu0 %v253
          %v255 = vpop.xlane.xlu0 %254
          %v256 = vrot.slane %v255, 4
          %v257 = vadd.f32 %v255, %v256
          %v258 = vrot.slane %v257, 2
          %v259 = vadd.f32 %v257, %v258
          %v260 = vrot.slane %v259, 1
          %v261 = vadd.f32 %v259, %v260
          %s262 = vtos %v261
          %s263 = smul.f32 %s262, 0.5
          %s264 = scalar_lea.smem [#allocation10], 0
          %265 = sst [smem:[%s264]] %s263
        $region48: #{tpu_custom_call.1} parent=31 // pred_fallthru
          _
        // Predicated region
        $region49: #{tpu_custom_call.1} parent=31 // pred_check
          %p266 = pneg %p107
        $region50: #{tpu_custom_call.1} parent=31 // pred_check_branch
          %268 = sbr.rel (%p266) target = $region52
        $region51: #{tpu_custom_call.1} parent=31 // pred_region
          %s270 = ssub.s32 16, 16
          %271 = vsyncadd [#allocation7], %s270
          %274 = dma.smem_to_hbm [#allocation10], 16, %s3, [#allocation7]
        $region52: #{tpu_custom_call.1} parent=31 // pred_fallthru
          _
        // Predicated region
        $region53: #{tpu_custom_call.1} parent=31 // pred_check
          %p275 = pneg %p107
        $region54: #{tpu_custom_call.1} parent=31 // pred_check_branch
          %277 = sbr.rel (%p275) target = $region56
        $region55: #{tpu_custom_call.1} parent=31 // pred_region
          %278 = dma.done [#allocation7], 16
        $region56: #{tpu_custom_call.1} parent=31 // pred_fallthru
          _
        %279 = sfence
      $region32: #{tpu_custom_call.1} parent=5 // pred_fallthru
        _
      %p280 = scmp.le.s32.totalorder 2, %s16
      // Predicated region
      $region57: #{tpu_custom_call.1} parent=5 // pred_check
        %p281 = pneg %p280
      $region58: #{tpu_custom_call.1} parent=5 // pred_check_branch
        %283 = sbr.rel (%p281) target = $region60
      $region59: #{tpu_custom_call.1} parent=5 // pred_region
        %s284 = ssub.s32 %s16, 2
      $region60: #{tpu_custom_call.1} parent=5 // pred_fallthru
        _
    $region6: #{tpu_custom_call.1} parent=1 // loop_footer
      %s20 = sadd.s32 1, %s16
    $region7: #{tpu_custom_call.1} parent=1 // loop_footer_branch
      %15 = sbr.rel target = $region3
    $region8: #{tpu_custom_call.1} parent=1 // loop_exit
      _
    %285 = vsyncpa [#allocation6], 1
    %s286 = scalar_lea.sflag [#allocation6], 1
    %287 = vsyncpa %s286, 1
    %288 = vsyncpa [#allocation9], 1
    %s289 = scalar_lea.sflag [#allocation9], 1
    %290 = vsyncpa %s289, 1
    %291 = vsyncpa [#allocation7], 1
    %s292 = scalar_lea.sflag [#allocation7], 1
    %293 = vsyncpa %s292, 1

</llo_original>
